<compile_context>
chip_gen: v7x
topology: tpu7x:2x2x1
jax: 0.10.0
libtpu: 0.0.40
codegen_flags: <defaults>
</compile_context>

<pallas_src>
import functools

import jax
import jax.numpy as jnp
from jax.experimental import pallas as pl
from jax.experimental.pallas import tpu as pltpu

PATCH = 4                 # patch size P
EMBED = 32                # shared embedding dim D
LANES = 128               # output lane width (safe on v5e/v6e/v7x)
TARGET_TILE_BYTES = 4 * 1024 * 1024   # ~4 MiB input tile -> ~85%+ of HBM roofline
                                      # (double-buffered in+out stays well under the
                                      # 32 MiB default scoped VMEM, incl. v7x)


def _round_up(a, b):
    return ((a + b - 1) // b) * b


def _img_proj_kernel(x_ref, w_ref, b_ref, o_ref):
    """Image-patch projection, `pack` tokens per lane-dense output row.

    x_ref : (tm, pack*K)      packed patch features (pack tokens per row)
    w_ref : (pack*K, pack*D)  block-diagonal projection weight (VMEM-resident)
    b_ref : (1, pack*D)       packed bias (f32)
    o_ref : (tm, pack*D)      lane-dense packed image tokens
    """
    acc = jnp.dot(x_ref[...], w_ref[...], preferred_element_type=jnp.float32)
    o_ref[...] = (acc + b_ref[...]).astype(o_ref.dtype)


@functools.partial(jax.jit, static_argnames=("patch", "compute_dtype"))
def joint_image_weather_tokenizer(image, weather, w_img, b_img, w_w, b_w,
                                  patch=PATCH, compute_dtype=jnp.bfloat16):
    """image: [B,C,H,W] (NCHW); weather: [B,T_w,F_w]; returns [B, N_img+T_w, D].

    compute_dtype: dtype for the image-path operands (default bf16; MXU
    accumulation stays f32, output keeps the input dtype). Pass jnp.float32 for
    bit-tight numerics.
    """
    B, C, H, W = image.shape
    _, T_w, F_w = weather.shape
    F_img, D = w_img.shape
    assert H % patch == 0 and W % patch == 0, "H, W must be divisible by patch"
    assert F_img == C * patch * patch
    out_dtype = image.dtype
    cdt = compute_dtype or image.dtype

    Hp, Wq = H // patch, W // patch
    N_img = Hp * Wq
    M_img = B * N_img                 # batch folded into the matmul M dimension

    # ---- patchify: ONE fused HBM pass (read NCHW image, write bf16 patches) --
    # TODO(synk): at production image sizes, fold this patchify into the kernel
    # (NCHW slab BlockSpec + in-VMEM relayout) to remove this HBM pass as well.
    patches = image.reshape(B, C, Hp, patch, Wq, patch)
    patches = patches.transpose(0, 2, 4, 1, 3, 5).reshape(M_img, F_img).astype(cdt)

    # ---- lane-dense token packing ---------------------------------------------
    if D <= LANES and LANES % D == 0:
        pack = LANES // D
    else:
        pack = 1   # TODO(synk): non-divisor D falls back to masked (vst.msk) stores.

    K = F_img
    Mp_raw = -(-M_img // pack)                    # packed rows needed

    # ---- M tiling: big (~4 MiB) input tiles, grid only as long as needed ------
    itemsize = jnp.dtype(cdt).itemsize
    row_bytes = pack * K * itemsize
    tm_target = max(8, (TARGET_TILE_BYTES // row_bytes) // 8 * 8)
    tm = min(tm_target, _round_up(Mp_raw, 8))     # sublane-aligned tile rows
    num_tiles = -(-Mp_raw // tm)
    Mp = num_tiles * tm

    pad_rows = Mp * pack - M_img
    if pad_rows:
        patches = jnp.pad(patches, ((0, pad_rows), (0, 0)))
    x_packed = patches.reshape(Mp, pack * K)      # pure row-major reshape (free)

    # Small block-diagonal weight (pack*K, pack*D): 64-128 KiB, fetched once
    # (constant index_map) and VMEM-resident across all grid steps.
    if pack > 1:
        w_blk = jnp.kron(jnp.eye(pack, dtype=cdt), w_img.astype(cdt))
    else:
        w_blk = w_img.astype(cdt)
    b_blk = jnp.tile(b_img.reshape(1, D).astype(jnp.float32), (1, pack))

    flops = 2 * Mp * (pack * K) * (pack * D)
    bytes_accessed = (x_packed.size * itemsize
                      + w_blk.size * itemsize
                      + b_blk.size * 4
                      + Mp * pack * D * jnp.dtype(out_dtype).itemsize)

    out_packed = pl.pallas_call(
        _img_proj_kernel,
        out_shape=jax.ShapeDtypeStruct((Mp, pack * D), out_dtype),
        grid_spec=pltpu.PrefetchScalarGridSpec(
            num_scalar_prefetch=0,
            grid=(num_tiles,),
            in_specs=[
                pl.BlockSpec((tm, pack * K), lambda i: (i, 0)),
                pl.BlockSpec((pack * K, pack * D), lambda i: (0, 0)),
                pl.BlockSpec((1, pack * D), lambda i: (0, 0)),
            ],
            out_specs=pl.BlockSpec((tm, pack * D), lambda i: (i, 0)),
        ),
        compiler_params=pltpu.CompilerParams(
            dimension_semantics=("parallel",)),
        cost_estimate=pl.CostEstimate(flops=flops, transcendentals=0,
                                      bytes_accessed=bytes_accessed),
    )(x_packed, w_blk, b_blk)

    # Unpack: (Mp, pack*D) -> (Mp*pack, D) is a pure row-major reshape.
    img_tok = out_packed.reshape(Mp * pack, D)[:M_img].reshape(B, N_img, D)

    # Weather path: tiny (T_w << N_img) -> plain XLA matmul, exact f32.
    wth_tok = (weather.astype(jnp.float32) @ w_w.astype(jnp.float32)
               + b_w.astype(jnp.float32)).astype(out_dtype)

    return jnp.concatenate([img_tok, wth_tok], axis=1)


def _reference(image, weather, w_img, b_img, w_w, b_w, patch=PATCH):
    """Pure-JAX reference for correctness check."""
    B, C, H, W = image.shape
    Hp, Wq = H // patch, W // patch
    patches = image.reshape(B, C, Hp, patch, Wq, patch)
    patches = patches.transpose(0, 2, 4, 1, 3, 5).reshape(
        B, Hp * Wq, C * patch * patch)
    img_tok = patches @ w_img + b_img
    w_tok = weather @ w_w + b_w
    return jnp.concatenate([img_tok, w_tok], axis=1)


if __name__ == "__main__":
    key = jax.random.PRNGKey(0)
    k_img, k_wx, k_wi, k_bi, k_ww, k_bw = jax.random.split(key, 6)

    B, C, H, W = 2, 4, 16, 16   # image at time t
    T_w, F_w = 8, 8             # weather at time t+1
    D = EMBED
    F_img = C * PATCH * PATCH

    image = jax.random.normal(k_img, (B, C, H, W), dtype=jnp.float32)
    weather = jax.random.normal(k_wx, (B, T_w, F_w), dtype=jnp.float32)

    # Deterministic synthetic parameters (shared embedding space projections).
    w_img = (jax.random.normal(k_wi, (F_img, D), dtype=jnp.float32)
             * (1.0 / jnp.sqrt(F_img)))
    b_img = jax.random.normal(k_bi, (D,), dtype=jnp.float32) * 0.01
    w_w = (jax.random.normal(k_ww, (F_w, D), dtype=jnp.float32)
           * (1.0 / jnp.sqrt(F_w)))
    b_w = jax.random.normal(k_bw, (D,), dtype=jnp.float32) * 0.01

    ref = _reference(image, weather, w_img, b_img, w_w, b_w)
    n_tok = (H // PATCH) * (W // PATCH) + T_w

    # f32 compute path: tight check.
    out_f32 = joint_image_weather_tokenizer(image, weather, w_img, b_img, w_w, b_w,
                                            compute_dtype=jnp.float32)
    out_f32 = jax.block_until_ready(out_f32)
    assert out_f32.shape == (B, n_tok, D)
    assert out_f32.dtype == image.dtype
    assert jnp.allclose(out_f32, ref, atol=1e-5, rtol=1e-5)

    # Default bf16 compute path (f32 accumulation / f32 output): looser check.
    out_bf = joint_image_weather_tokenizer(image, weather, w_img, b_img, w_w, b_w)
    out_bf = jax.block_until_ready(out_bf)
    assert out_bf.shape == (B, n_tok, D)
    assert out_bf.dtype == image.dtype
    assert jnp.allclose(out_bf, ref, atol=5e-2, rtol=5e-2)

    print("KERNEL_OK")
</pallas_src>

<mosaic_0001>
module attributes {stable_mosaic.version = 11 : i64} {
  func.func @_img_proj_kernel(%arg0: i32, %arg1: memref<8x256xf32, #tpu.memory_space<vmem>>, %arg2: memref<256x128xf32, #tpu.memory_space<vmem>>, %arg3: memref<1x128xf32, #tpu.memory_space<vmem>>, %arg4: memref<8x128xf32, #tpu.memory_space<vmem>>) attributes {dimension_semantics = [#tpu.dimension_semantics<parallel>], iteration_bounds = array<i64: 1>, scalar_prefetch = 0 : i64, scratch_operands = 0 : i64, tpu.core_type = #tpu.core_type<tc>, window_params = [{transform_indices = @transform_0, window_bounds = array<i64: 8, 256>}, {pipeline_mode = #tpu.pipeline_mode<synchronous>, transform_indices = @transform_1, window_bounds = array<i64: 256, 128>}, {pipeline_mode = #tpu.pipeline_mode<synchronous>, transform_indices = @transform_2, window_bounds = array<i64: 1, 128>}, {transform_indices = @transform_3, window_bounds = array<i64: 8, 128>}]} {
    %c0 = arith.constant 0 : index
    %c0_0 = arith.constant 0 : index
    %0 = vector.load %arg1[%c0, %c0_0] : memref<8x256xf32, #tpu.memory_space<vmem>>, vector<8x256xf32>
    %c0_1 = arith.constant 0 : index
    %c0_2 = arith.constant 0 : index
    %1 = vector.load %arg2[%c0_1, %c0_2] : memref<256x128xf32, #tpu.memory_space<vmem>>, vector<256x128xf32>
    %cst = arith.constant dense<0.000000e+00> : vector<8x128xf32>
    %2 = tpu.matmul %0, %1, %cst {dimension_numbers = #tpu.dot_dimension_numbers<[1], [0], [0], [1], [0, 0, 1, 1], [], []>} : vector<8x256xf32>, vector<256x128xf32>, vector<8x128xf32> -> vector<8x128xf32>
    %c0_3 = arith.constant 0 : index
    %c0_4 = arith.constant 0 : index
    %3 = vector.load %arg3[%c0_3, %c0_4] : memref<1x128xf32, #tpu.memory_space<vmem>>, vector<1x128xf32>
    %4 = vector.broadcast %3 : vector<1x128xf32> to vector<8x128xf32>
    %5 = arith.addf %2, %4 : vector<8x128xf32>
    %c0_5 = arith.constant 0 : index
    %c0_6 = arith.constant 0 : index
    %6 = vector.load %arg4[%c0_5, %c0_6] : memref<8x128xf32, #tpu.memory_space<vmem>>, vector<8x128xf32>
    tpu.vector_store %arg4[%c0_5, %c0_6], %5 {strides = array<i32>} : memref<8x128xf32, #tpu.memory_space<vmem>>, vector<8x128xf32>,
    return
  }
  func.func @transform_0(%arg0: i32) -> (i32, i32) {
    %c0_i32 = arith.constant 0 : i32
    %c0_i32_0 = arith.constant 0 : i32
    return %arg0, %c0_i32 : i32, i32
  }
  func.func @transform_1(%arg0: i32) -> (i32, i32) {
    %c0_i32 = arith.constant 0 : i32
    %c0_i32_0 = arith.constant 0 : i32
    %c0_i32_1 = arith.constant 0 : i32
    return %c0_i32, %c0_i32_0 : i32, i32
  }
  func.func @transform_2(%arg0: i32) -> (i32, i32) {
    %c0_i32 = arith.constant 0 : i32
    %c0_i32_0 = arith.constant 0 : i32
    %c0_i32_1 = arith.constant 0 : i32
    return %c0_i32, %c0_i32_0 : i32, i32
  }
  func.func @transform_3(%arg0: i32) -> (i32, i32) {
    %c0_i32 = arith.constant 0 : i32
    %c0_i32_0 = arith.constant 0 : i32
    return %arg0, %c0_i32 : i32, i32
  }
}

</mosaic_0001>

<llo_original>
// kernel: joint_image_weather_tokenizer.1
$region0: #{joint_image_weather_tokenizer.1}
  #allocation0 [shape = 'u32[]', space=smem, size = 0x4, offset = 0x4, fixed_abs, tag = 'smem constant byte address 0x4 - core index']
  #allocation1 [shape = 'u32[144,128]{1,0:T(1,128)}', space=vmem, size = 0x12000, scoped, tag = 'internal scratch']
  %s0 = inlined_call_operand.vmem [shape: f32[8,256], index: 0, kind: input, shape index: {}]
  %s1 = inlined_call_operand.vmem [shape: f32[256,128], index: 1, kind: input, shape index: {}]
  %s2 = inlined_call_operand.vmem [shape: f32[1,128], index: 2, kind: input, shape index: {}]
  %s3 = inlined_call_operand.vmem [shape: f32[8,128], index: 3, kind: output, shape index: {}]
  %s4 = sld [smem:[#allocation0]]
  $region22: #{joint_image_weather_tokenizer.1} parent=0
    _
  %s6 = ssub.s32 1, %s4
  %s7 = scalar_select 0, %s6, %s4
  // Predicated region
  $region2: #{joint_image_weather_tokenizer.1} parent=0 // pred_check
    _
  $region3: #{joint_image_weather_tokenizer.1} parent=0 // pred_check_branch
    %9 = sbr.rel (0) target = $region5
  $region4: #{joint_image_weather_tokenizer.1} parent=0 // pred_region
    _
  $region5: #{joint_image_weather_tokenizer.1} parent=0 // pred_fallthru
    _
  // Predicated region
  $region6: #{joint_image_weather_tokenizer.1} parent=0 // pred_check
    _
  $region7: #{joint_image_weather_tokenizer.1} parent=0 // pred_check_branch
    %11 = sbr.rel (0) target = $region9
  $region8: #{joint_image_weather_tokenizer.1} parent=0 // pred_region
    _
  $region9: #{joint_image_weather_tokenizer.1} parent=0 // pred_fallthru
    _
  // Predicated region
  $region10: #{joint_image_weather_tokenizer.1} parent=0 // pred_check
    _
  $region11: #{joint_image_weather_tokenizer.1} parent=0 // pred_check_branch
    %13 = sbr.rel (0) target = $region13
  $region12: #{joint_image_weather_tokenizer.1} parent=0 // pred_region
    _
  $region13: #{joint_image_weather_tokenizer.1} parent=0 // pred_fallthru
    _
  %v14 = vld [vmem:[%s0] sm:$0xff]
  %v15 = vld [vmem:[%s0 + $0x8] sm:$0xff]
  %v16 = vld [vmem:[%s1] sm:$0xff]
  %v17 = vld [vmem:[%s1 + $0x8] sm:$0xff]
  %v18 = vld [vmem:[%s1 + $0x10] sm:$0xff]
  %v19 = vld [vmem:[%s1 + $0x18] sm:$0xff]
  %v20 = vld [vmem:[%s1 + $0x20] sm:$0xff]
  %v21 = vld [vmem:[%s1 + $0x28] sm:$0xff]
  %v22 = vld [vmem:[%s1 + $0x30] sm:$0xff]
  %v23 = vld [vmem:[%s1 + $0x38] sm:$0xff]
  %v24 = vld [vmem:[%s1 + $0x40] sm:$0xff]
  %v25 = vld [vmem:[%s1 + $0x48] sm:$0xff]
  %v26 = vld [vmem:[%s1 + $0x50] sm:$0xff]
  %v27 = vld [vmem:[%s1 + $0x58] sm:$0xff]
  %v28 = vld [vmem:[%s1 + $0x60] sm:$0xff]
  %v29 = vld [vmem:[%s1 + $0x68] sm:$0xff]
  %v30 = vld [vmem:[%s1 + $0x70] sm:$0xff]
  %v31 = vld [vmem:[%s1 + $0x78] sm:$0xff]
  %v32 = vld [vmem:[%s1 + $0x80] sm:$0xff]
  %v33 = vld [vmem:[%s1 + $0x88] sm:$0xff]
  %v34 = vld [vmem:[%s1 + $0x90] sm:$0xff]
  %v35 = vld [vmem:[%s1 + $0x98] sm:$0xff]
  %v36 = vld [vmem:[%s1 + $0xa0] sm:$0xff]
  %v37 = vld [vmem:[%s1 + $0xa8] sm:$0xff]
  %v38 = vld [vmem:[%s1 + $0xb0] sm:$0xff]
  %v39 = vld [vmem:[%s1 + $0xb8] sm:$0xff]
  %v40 = vld [vmem:[%s1 + $0xc0] sm:$0xff]
  %v41 = vld [vmem:[%s1 + $0xc8] sm:$0xff]
  %v42 = vld [vmem:[%s1 + $0xd0] sm:$0xff]
  %v43 = vld [vmem:[%s1 + $0xd8] sm:$0xff]
  %v44 = vld [vmem:[%s1 + $0xe0] sm:$0xff]
  %v45 = vld [vmem:[%s1 + $0xe8] sm:$0xff]
  %v46 = vld [vmem:[%s1 + $0xf0] sm:$0xff]
  %v47 = vld [vmem:[%s1 + $0xf8] sm:$0xff]
  %v48 = vld [vmem:[%s2] sm:$0x1]
  %v50 = vlaneseq
  %v51 = vshrl.u32 %v50, 7
  %v52 = vsub.s32 0, %v51
  %v53 = vrot.slane %v48, %v52
  %55 = vmatprep.subr.mxu0 0.0
  %56 = vmatpush1.msra.mxu0 %v16
  %57 = vmatprep.subr.mxu0 0.0
  %58 = vmatpush1.msra.mxu0 %v17
  %59 = vmatprep.subr.mxu0 0.0
  %60 = vmatpush1.msra.mxu0 %v18
  %61 = vmatprep.subr.mxu0 0.0
  %62 = vmatpush1.msra.mxu0 %v19
  %63 = vmatprep.subr.mxu0 0.0
  %64 = vmatpush1.msra.mxu0 %v20
  %65 = vmatprep.subr.mxu0 0.0
  %66 = vmatpush1.msra.mxu0 %v21
  %67 = vmatprep.subr.mxu0 0.0
  %68 = vmatpush1.msra.mxu0 %v22
  %69 = vmatprep.subr.mxu0 0.0
  %70 = vmatpush1.msra.mxu0 %v23
  %71 = vmatprep.subr.mxu0 0.0
  %72 = vmatpush1.msra.mxu0 %v24
  %73 = vmatprep.subr.mxu0 0.0
  %74 = vmatpush1.msra.mxu0 %v25
  %75 = vmatprep.subr.mxu0 0.0
  %76 = vmatpush1.msra.mxu0 %v26
  %77 = vmatprep.subr.mxu0 0.0
  %78 = vmatpush1.msra.mxu0 %v27
  %79 = vmatprep.subr.mxu0 0.0
  %80 = vmatpush1.msra.mxu0 %v28
  %81 = vmatprep.subr.mxu0 0.0
  %82 = vmatpush1.msra.mxu0 %v29
  %83 = vmatprep.subr.mxu0 0.0
  %84 = vmatpush1.msra.mxu0 %v30
  %85 = vmatprep.subr.mxu0 0.0
  %86 = vmatpush1.msra.mxu0 %v31
  %87 = vmatprep.subr.mxu0 0.0
  %88 = vmatpush1.msra.mxu0 %v32
  %89 = vmatprep.subr.mxu0 0.0
  %90 = vmatpush1.msra.mxu0 %v33
  %91 = vmatprep.subr.mxu0 0.0
  %92 = vmatpush1.msra.mxu0 %v34
  %93 = vmatprep.subr.mxu0 0.0
  %94 = vmatpush1.msra.mxu0 %v35
  %95 = vmatprep.subr.mxu0 0.0
  %96 = vmatpush1.msra.mxu0 %v36
  %97 = vmatprep.subr.mxu0 0.0
  %98 = vmatpush1.msra.mxu0 %v37
  %99 = vmatprep.subr.mxu0 0.0
  %100 = vmatpush1.msra.mxu0 %v38
  %101 = vmatprep.subr.mxu0 0.0
  %102 = vmatpush1.msra.mxu0 %v39
  %103 = vmatprep.subr.mxu0 0.0
  %104 = vmatpush1.msra.mxu0 %v40
  %105 = vmatprep.subr.mxu0 0.0
  %106 = vmatpush1.msra.mxu0 %v41
  %107 = vmatprep.subr.mxu0 0.0
  %108 = vmatpush1.msra.mxu0 %v42
  %109 = vmatprep.subr.mxu0 0.0
  %110 = vmatpush1.msra.mxu0 %v43
  %111 = vmatprep.subr.mxu0 0.0
  %112 = vmatpush1.msra.mxu0 %v44
  %113 = vmatprep.subr.mxu0 0.0
  %114 = vmatpush1.msra.mxu0 %v45
  %115 = vmatprep.subr.mxu0 0.0
  %116 = vmatpush1.msra.mxu0 %v46
  %117 = vmatprep.subr.mxu0 0.0
  %118 = vmatpush1.msra.mxu0 %v47
  %119 = vmatprep.mubr.f32.mxu0 %v15
  %120 = vmatmul.mubr.f32.gmra.mrb[0].mxu0 %v14
  %v121 = vpop.f32.mrb[0].mxu0
  %v122 = vadd.f32 %v53, %v121
  %v123 = vpop.f32.mrb[0].mxu0
  %124 = vdwg.mxu0
  %125 = vst [vmem:[%s3] sm:$0xff] %v122
  // Predicated region
  $region14: #{joint_image_weather_tokenizer.1} parent=0 // pred_check
    _
  $region15: #{joint_image_weather_tokenizer.1} parent=0 // pred_check_branch
    %127 = sbr.rel (0) target = $region17
  $region16: #{joint_image_weather_tokenizer.1} parent=0 // pred_region
    _
  $region17: #{joint_image_weather_tokenizer.1} parent=0 // pred_fallthru
    _
  // Predicated region
  $region18: #{joint_image_weather_tokenizer.1} parent=0 // pred_check
    _
  $region19: #{joint_image_weather_tokenizer.1} parent=0 // pred_check_branch
    %129 = sbr.rel (0) target = $region21
  $region20: #{joint_image_weather_tokenizer.1} parent=0 // pred_region
    _
  $region21: #{joint_image_weather_tokenizer.1} parent=0 // pred_fallthru
    _

</llo_original>
